<compile_context>
chip_gen: v7x
topology: tpu7x:2x2x1
jax: 0.10.0
libtpu: 0.0.40
codegen_flags: <defaults>
</compile_context>

<pallas_src>
import functools

import jax
import jax.numpy as jnp
from jax.experimental import pallas as pl
from jax.experimental.pallas import tpu as pltpu


def mlp_kernel(x_ref, w1_ref, b1_ref, w2_ref, b2_ref, wht_ref, bht_ref, o_ref):
    # cast the f32 batch tile to bf16 for the MXU *inside* the kernel: the VALU
    # convert is hidden under the x DMA, and HBM only ever streams f32 x once.
    x = x_ref[...].astype(jnp.bfloat16)

    # hidden1 + relu (bf16 inputs, f32 accumulation)
    h1 = jnp.dot(x, w1_ref[...], preferred_element_type=jnp.float32)
    h1 = jnp.maximum(h1 + b1_ref[...], 0.0)

    # hidden2 + relu
    h2 = jnp.dot(h1.astype(jnp.bfloat16), w2_ref[...],
                 preferred_element_type=jnp.float32)
    h2 = jnp.maximum(h2 + b2_ref[...], 0.0)

    # both output heads fused into a single matmul, computed TRANSPOSED so the
    # store is lane-dense:  out_t[h, b] = sum_k wh_t[h, k] * h2[b, k]  -> (2, TB)
    out_t = jax.lax.dot_general(
        wht_ref[...], h2.astype(jnp.bfloat16),
        (((1,), (1,)), ((), ())),
        preferred_element_type=jnp.float32) + bht_ref[...]

    # sigmoid only on row 0 (binary head); row 1 (continuous head) passes through
    row = jax.lax.broadcasted_iota(jnp.int32, out_t.shape, 0)
    o_ref[...] = jnp.where(row == 0, jax.nn.sigmoid(out_t), out_t)


def _pick_tb(batch, tb):
    """Static batch-tile selection (outside jit)."""
    tb = max(128, (tb // 128) * 128)               # lane/MXU friendly multiple of 128
    if batch >= 256:
        # guarantee >= 2 grid steps so v7x's two TensorCores both get work
        tb = min(tb, max(128, ((batch // 2) // 128) * 128))
    else:
        tb = 128
    return tb


@functools.partial(jax.jit, static_argnames=("tb",))
def _forward_impl(x, w1_bf, b1, w2_bf, b2, wh_bf, bh_t, *, tb):
    B, D_in = x.shape
    H1 = w1_bf.shape[1]
    H2 = w2_bf.shape[1]

    const = lambda i: (0, 0)  # weights/biases: same block every step -> VMEM resident

    out_t = pl.pallas_call(
        mlp_kernel,
        out_shape=jax.ShapeDtypeStruct((2, B), jnp.float32),
        grid=(pl.cdiv(B, tb),),                       # ragged tail handled by Pallas
        in_specs=[
            pl.BlockSpec((tb, D_in), lambda i: (i, 0)),   # x batch tile (f32)
            pl.BlockSpec((D_in, H1), const),              # W1 (bf16)
            pl.BlockSpec((1, H1), const),                 # b1 (f32)
            pl.BlockSpec((H1, H2), const),                # W2 (bf16)
            pl.BlockSpec((1, H2), const),                 # b2 (f32)
            pl.BlockSpec((2, H2), const),                 # fused heads, transposed (bf16)
            pl.BlockSpec((2, 1), const),                  # fused head biases (f32)
        ],
        out_specs=pl.BlockSpec((2, tb), lambda i: (0, i)),  # lane-dense (2, TB) tile
        compiler_params=pltpu.CompilerParams(
            dimension_semantics=("parallel",),            # v7x: 2 TCs split the batch
        ),
    )(x, w1_bf, b1, w2_bf, b2, wh_bf, bh_t)
    return out_t


def model_forward(x, w1_bf, b1, w2_bf, b2, wh_bf, bh_t, *, tb=2048,
                  transposed_out=False):
    """x: (B, D_in) f32. Returns (B, 2) f32 predictions (or (2, B) if requested)."""
    tb = _pick_tb(x.shape[0], tb)
    out_t = _forward_impl(x, w1_bf, b1, w2_bf, b2, wh_bf, bh_t, tb=tb)
    if transposed_out:
        return out_t            # (2, B): avoids the extra XLA transpose
    return out_t.T              # (B, 2): matches the module's layout


def init_params(key, input_shape, hidden1, hidden2):
    ks = jax.random.split(key, 8)

    def linear_init(kw, kb, fan_in, fan_out):
        # mimic PyTorch nn.Linear default init: U(-1/sqrt(fan_in), 1/sqrt(fan_in))
        bound = 1.0 / jnp.sqrt(float(fan_in))
        w = jax.random.uniform(kw, (fan_in, fan_out), jnp.float32, -bound, bound)
        b = jax.random.uniform(kb, (1, fan_out), jnp.float32, -bound, bound)
        return w, b

    w1, b1 = linear_init(ks[0], ks[1], input_shape, hidden1)
    w2, b2 = linear_init(ks[2], ks[3], hidden1, hidden2)
    w_bin, b_bin = linear_init(ks[4], ks[5], hidden2, 1)
    w_cont, b_cont = linear_init(ks[6], ks[7], hidden2, 1)
    # fuse the two 1-wide heads, stored transposed: (2, hidden2) / (2, 1)
    wh_t = jnp.concatenate([w_bin.T, w_cont.T], axis=0)
    bh_t = jnp.concatenate([b_bin.T, b_cont.T], axis=0)
    return w1, b1, w2, b2, wh_t, bh_t


def prepare_params(w1, b1, w2, b2, wh_t, bh_t):
    """One-time weight conversion for the MXU (done OUTSIDE the per-call path)."""
    return (w1.astype(jnp.bfloat16), b1,
            w2.astype(jnp.bfloat16), b2,
            wh_t.astype(jnp.bfloat16), bh_t)


def reference_forward(x, w1, b1, w2, b2, wh_t, bh_t):
    h1 = jnp.maximum(x @ w1 + b1, 0.0)
    h2 = jnp.maximum(h1 @ w2 + b2, 0.0)
    out = h2 @ wh_t.T + bh_t.T
    return out.at[:, 0].set(jax.nn.sigmoid(out[:, 0]))


if __name__ == "__main__":
    key = jax.random.PRNGKey(0)
    k_x, k_p = jax.random.split(key)

    # small shapes consistent with the module's forward (tabular MLP)
    batch, input_shape, hidden1, hidden2 = 512, 32, 64, 32

    x = jax.random.normal(k_x, (batch, input_shape), dtype=jnp.float32)
    params_f32 = init_params(k_p, input_shape, hidden1, hidden2)
    params = prepare_params(*params_f32)   # weights -> bf16 once, biases stay f32

    # default tb=2048 gets capped to 256 here -> grid=(2,), exercising the
    # multi-step grid with VMEM-resident weights (and both TCs on v7x)
    pred = model_forward(x, *params)
    jax.block_until_ready(pred)

    # sanity: shape, finiteness, match against pure-JAX f32 reference (bf16 tol),
    # binary column in [0, 1]
    assert pred.shape == (batch, 2)
    assert bool(jnp.all(jnp.isfinite(pred)))
    ref = reference_forward(x, *params_f32)
    assert bool(jnp.max(jnp.abs(pred - ref)) < 5e-2)
    assert bool(jnp.all((pred[:, 0] >= 0.0) & (pred[:, 0] <= 1.0)))

    print("KERNEL_OK")
</pallas_src>

<mosaic_0001>
module attributes {stable_mosaic.version = 11 : i64} {
  func.func @mlp_kernel(%arg0: i32, %arg1: memref<256x32xf32, #tpu.memory_space<vmem>>, %arg2: memref<32x64xbf16, #tpu.memory_space<vmem>>, %arg3: memref<1x64xf32, #tpu.memory_space<vmem>>, %arg4: memref<64x32xbf16, #tpu.memory_space<vmem>>, %arg5: memref<1x32xf32, #tpu.memory_space<vmem>>, %arg6: memref<2x32xbf16, #tpu.memory_space<vmem>>, %arg7: memref<2x1xf32, #tpu.memory_space<vmem>>, %arg8: memref<2x256xf32, #tpu.memory_space<vmem>>) attributes {dimension_semantics = [#tpu.dimension_semantics<parallel>], iteration_bounds = array<i64: 2>, scalar_prefetch = 0 : i64, scratch_operands = 0 : i64, tpu.core_type = #tpu.core_type<tc>, window_params = [{transform_indices = @transform_0, window_bounds = array<i64: 256, 32>}, {pipeline_mode = #tpu.pipeline_mode<synchronous>, transform_indices = @transform_1, window_bounds = array<i64: 32, 64>}, {pipeline_mode = #tpu.pipeline_mode<synchronous>, transform_indices = @transform_2, window_bounds = array<i64: 1, 64>}, {pipeline_mode = #tpu.pipeline_mode<synchronous>, transform_indices = @transform_3, window_bounds = array<i64: 64, 32>}, {pipeline_mode = #tpu.pipeline_mode<synchronous>, transform_indices = @transform_4, window_bounds = array<i64: 1, 32>}, {pipeline_mode = #tpu.pipeline_mode<synchronous>, transform_indices = @transform_5, window_bounds = array<i64: 2, 32>}, {pipeline_mode = #tpu.pipeline_mode<synchronous>, transform_indices = @transform_6, window_bounds = array<i64: 2, 1>}, {transform_indices = @transform_7, window_bounds = array<i64: 2, 256>}]} {
    %c0 = arith.constant 0 : index
    %c0_0 = arith.constant 0 : index
    %0 = vector.load %arg1[%c0, %c0_0] : memref<256x32xf32, #tpu.memory_space<vmem>>, vector<256x32xf32>
    %1 = arith.truncf %0 : vector<256x32xf32> to vector<256x32xbf16>
    %c0_1 = arith.constant 0 : index
    %c0_2 = arith.constant 0 : index
    %2 = vector.load %arg2[%c0_1, %c0_2] : memref<32x64xbf16, #tpu.memory_space<vmem>>, vector<32x64xbf16>
    %cst = arith.constant dense<0.000000e+00> : vector<256x64xf32>
    %3 = tpu.matmul %1, %2, %cst {dimension_numbers = #tpu.dot_dimension_numbers<[1], [0], [0], [1], [0, 0, 1, 1], [], []>} : vector<256x32xbf16>, vector<32x64xbf16>, vector<256x64xf32> -> vector<256x64xf32>
    %c0_3 = arith.constant 0 : index
    %c0_4 = arith.constant 0 : index
    %4 = vector.load %arg3[%c0_3, %c0_4] : memref<1x64xf32, #tpu.memory_space<vmem>>, vector<1x64xf32>
    %5 = vector.broadcast %4 : vector<1x64xf32> to vector<256x64xf32>
    %6 = arith.addf %3, %5 : vector<256x64xf32>
    %cst_5 = arith.constant 0.000000e+00 : f32
    %7 = vector.broadcast %cst_5 : f32 to vector<256x64xf32>
    %8 = arith.maximumf %6, %7 : vector<256x64xf32>
    %9 = arith.truncf %8 : vector<256x64xf32> to vector<256x64xbf16>
    %c0_6 = arith.constant 0 : index
    %c0_7 = arith.constant 0 : index
    %10 = vector.load %arg4[%c0_6, %c0_7] : memref<64x32xbf16, #tpu.memory_space<vmem>>, vector<64x32xbf16>
    %cst_8 = arith.constant dense<0.000000e+00> : vector<256x32xf32>
    %11 = tpu.matmul %9, %10, %cst_8 {dimension_numbers = #tpu.dot_dimension_numbers<[1], [0], [0], [1], [0, 0, 1, 1], [], []>} : vector<256x64xbf16>, vector<64x32xbf16>, vector<256x32xf32> -> vector<256x32xf32>
    %c0_9 = arith.constant 0 : index
    %c0_10 = arith.constant 0 : index
    %12 = vector.load %arg5[%c0_9, %c0_10] : memref<1x32xf32, #tpu.memory_space<vmem>>, vector<1x32xf32>
    %13 = vector.broadcast %12 : vector<1x32xf32> to vector<256x32xf32>
    %14 = arith.addf %11, %13 : vector<256x32xf32>
    %cst_11 = arith.constant 0.000000e+00 : f32
    %15 = vector.broadcast %cst_11 : f32 to vector<256x32xf32>
    %16 = arith.maximumf %14, %15 : vector<256x32xf32>
    %c0_12 = arith.constant 0 : index
    %c0_13 = arith.constant 0 : index
    %17 = vector.load %arg6[%c0_12, %c0_13] : memref<2x32xbf16, #tpu.memory_space<vmem>>, vector<2x32xbf16>
    %18 = arith.truncf %16 : vector<256x32xf32> to vector<256x32xbf16>
    %cst_14 = arith.constant dense<0.000000e+00> : vector<2x256xf32>
    %19 = tpu.matmul %17, %18, %cst_14 {dimension_numbers = #tpu.dot_dimension_numbers<[1], [1], [0], [0], [0, 0, 1, 0], [], []>} : vector<2x32xbf16>, vector<256x32xbf16>, vector<2x256xf32> -> vector<2x256xf32>
    %c0_15 = arith.constant 0 : index
    %c0_16 = arith.constant 0 : index
    %20 = vector.load %arg7[%c0_15, %c0_16] : memref<2x1xf32, #tpu.memory_space<vmem>>, vector<2x1xf32>
    %21 = vector.broadcast %20 : vector<2x1xf32> to vector<2x256xf32>
    %22 = arith.addf %19, %21 : vector<2x256xf32>
    %23 = tpu.iota {dimensions = array<i32: 0>} : vector<2x256xi32>
    %c0_i32 = arith.constant 0 : i32
    %24 = vector.broadcast %c0_i32 : i32 to vector<2x256xi32>
    %25 = arith.cmpi eq, %23, %24 : vector<2x256xi32>
    %26 = arith.negf %22 : vector<2x256xf32>
    %27 = math.exp %26 : vector<2x256xf32>
    %cst_17 = arith.constant 1.000000e+00 : f32
    %28 = vector.broadcast %cst_17 : f32 to vector<2x256xf32>
    %29 = arith.addf %28, %27 : vector<2x256xf32>
    %30 = arith.divf %28, %29 : vector<2x256xf32>
    %31 = arith.select %25, %30, %22 : vector<2x256xi1>, vector<2x256xf32>
    %c0_18 = arith.constant 0 : index
    %c0_19 = arith.constant 0 : index
    %32 = vector.load %arg8[%c0_18, %c0_19] : memref<2x256xf32, #tpu.memory_space<vmem>>, vector<2x256xf32>
    tpu.vector_store %arg8[%c0_18, %c0_19], %31 {strides = array<i32>} : memref<2x256xf32, #tpu.memory_space<vmem>>, vector<2x256xf32>,
    return
  }
  func.func @transform_0(%arg0: i32) -> (i32, i32) {
    %c0_i32 = arith.constant 0 : i32
    %c0_i32_0 = arith.constant 0 : i32
    return %arg0, %c0_i32 : i32, i32
  }
  func.func @transform_1(%arg0: i32) -> (i32, i32) {
    %c0_i32 = arith.constant 0 : i32
    %c0_i32_0 = arith.constant 0 : i32
    %c0_i32_1 = arith.constant 0 : i32
    return %c0_i32, %c0_i32_0 : i32, i32
  }
  func.func @transform_2(%arg0: i32) -> (i32, i32) {
    %c0_i32 = arith.constant 0 : i32
    %c0_i32_0 = arith.constant 0 : i32
    %c0_i32_1 = arith.constant 0 : i32
    return %c0_i32, %c0_i32_0 : i32, i32
  }
  func.func @transform_3(%arg0: i32) -> (i32, i32) {
    %c0_i32 = arith.constant 0 : i32
    %c0_i32_0 = arith.constant 0 : i32
    %c0_i32_1 = arith.constant 0 : i32
    return %c0_i32, %c0_i32_0 : i32, i32
  }
  func.func @transform_4(%arg0: i32) -> (i32, i32) {
    %c0_i32 = arith.constant 0 : i32
    %c0_i32_0 = arith.constant 0 : i32
    %c0_i32_1 = arith.constant 0 : i32
    return %c0_i32, %c0_i32_0 : i32, i32
  }
  func.func @transform_5(%arg0: i32) -> (i32, i32) {
    %c0_i32 = arith.constant 0 : i32
    %c0_i32_0 = arith.constant 0 : i32
    %c0_i32_1 = arith.constant 0 : i32
    return %c0_i32, %c0_i32_0 : i32, i32
  }
  func.func @transform_6(%arg0: i32) -> (i32, i32) {
    %c0_i32 = arith.constant 0 : i32
    %c0_i32_0 = arith.constant 0 : i32
    %c0_i32_1 = arith.constant 0 : i32
    return %c0_i32, %c0_i32_0 : i32, i32
  }
  func.func @transform_7(%arg0: i32) -> (i32, i32) {
    %c0_i32 = arith.constant 0 : i32
    %c0_i32_0 = arith.constant 0 : i32
    return %c0_i32, %arg0 : i32, i32
  }
}

</mosaic_0001>

<llo_original>
// kernel: _forward_impl.1
$region0: #{_forward_impl.1}
  #allocation0 [shape = 'u32[]', space=smem, size = 0x4, offset = 0x4, fixed_abs, tag = 'smem constant byte address 0x4 - core index']
  #allocation1 [shape = 'u32[144,128]{1,0:T(1,128)}', space=vmem, size = 0x12000, scoped, tag = 'internal scratch']
  %s0 = inlined_call_operand.vmem [shape: f32[512,32], index: 0, kind: input, shape index: {}]
  %s1 = inlined_call_operand.vmem [shape: bf16[32,64], index: 1, kind: input, shape index: {}]
  %s2 = inlined_call_operand.vmem [shape: f32[1,64], index: 2, kind: input, shape index: {}]
  %s3 = inlined_call_operand.vmem [shape: bf16[64,32], index: 3, kind: input, shape index: {}]
  %s4 = inlined_call_operand.vmem [shape: f32[1,32], index: 4, kind: input, shape index: {}]
  %s5 = inlined_call_operand.vmem [shape: bf16[2,32], index: 5, kind: input, shape index: {}]
  %s6 = inlined_call_operand.vmem [shape: f32[2,1], index: 6, kind: input, shape index: {}]
  %s7 = inlined_call_operand.hbm [shape: f32[2,512], index: 7, kind: output, shape index: {}]
  %s8 = sld [smem:[#allocation0]]
  $region61: #{_forward_impl.1} parent=0
    _
  %s10 = ssub.s32 1, %s8
  %s11 = scalar_select 0, %s10, %s8
  $region1: #{_forward_impl.1} parent=0
    #allocation2 [shape = 'u8[4096]{0}', space=vmem, size = 0x1000, scoped, tag = 'output window, operand 0']
    #allocation3 [shape = 's32[2]{0}', space=sflag, size = 0x8, scoped, tag = 'scoped memory for _forward_impl.1']
    %12 = vsyncpa [#allocation3], 0
    %s13 = scalar_lea.sflag [#allocation3], 1
    %14 = vsyncpa %s13, 0
    loop: start=0, step=1, limit=4
    $region2: #{_forward_impl.1} parent=1 // loop_pre_header
      _
    $region3: #{_forward_impl.1} parent=1 // loop_header
      %s16 = sphi 0, %s20
      %p17 = scmp.ge.s32.totalorder %s16, 4
      %s26 = sphi 0, %s28
      %s29 = sphi 0, %s26
      %s30 = sphi 0, %s29
      %s46 = sphi 0, %s30
      %s50 = sphi 0, %s50
      %s52 = sphi 0, %s50
      %s53 = sphi 0, %s52
      %s67 = sphi 0, %s53
      %s71 = sphi 0, %s71
      %s73 = sphi 0, %s71
      %s74 = sphi 0, %s73
      %s88 = sphi 0, %s74
      %s92 = sphi 0, %s92
      %s94 = sphi 0, %s92
      %s95 = sphi 0, %s94
      %s109 = sphi 0, %s95
      %s113 = sphi 0, %s113
      %s115 = sphi 0, %s113
      %s116 = sphi 0, %s115
      %s130 = sphi 0, %s116
      %s134 = sphi 0, %s134
      %s136 = sphi 0, %s134
      %s137 = sphi 0, %s136
      %s151 = sphi 0, %s137
      %s155 = sphi 0, %s155
      %s157 = sphi 0, %s155
      %s158 = sphi 0, %s157
      %s172 = sphi 0, %s158
      %s178 = sphi 0, %s180
      %s181 = sphi 0, %s178
      %s182 = sphi 0, %s181
      %s198 = sphi 0, %s182
    $region4: #{_forward_impl.1} parent=1 // loop_header_branch
      %19 = sbr.rel (%p17) target = $region8
    $region5: #{_forward_impl.1} parent=1 // loop_body
      %s21 = ssub.s32 %s16, 1
      %s22 = ssub.s32 %s16, 2
      %s23 = sadd.s32 %s16, 1
      %s24 = ssub.s32 %s16, %s23
      %p25 = scmp.eq.s32.totalorder %s24, 0
      %s27 = sadd.s32 %s26, 1
      %s28 = scalar_select %p25, %s26, %s27
      %p31 = pneg %p25
      %p32 = scmp.eq.s32.totalorder %s16, 1
      %p33 = por %p31, %p32
      %p34 = scmp.ne.s32.totalorder %s26, %s29
      %p35 = scmp.eq.s32.totalorder %s16, 0
      %p36 = por %p34, %p35
      %p37 = scmp.ne.s32.totalorder %s26, %s29
      %p38 = scmp.eq.s32.totalorder %s21, 1
      %p39 = por %p37, %p38
      %p40 = scmp.ne.s32.totalorder %s29, %s30
      %p41 = scmp.eq.s32.totalorder %s21, 0
      %p42 = por %p40, %p41
      %p43 = scmp.ne.s32.totalorder %s29, %s30
      %p44 = scmp.eq.s32.totalorder %s22, 1
      %p45 = por %p43, %p44
      %p47 = scmp.ne.s32.totalorder %s30, %s46
      %p48 = scmp.eq.s32.totalorder %s22, 0
      %p49 = por %p47, %p48
      %s51 = sadd.s32 %s50, 1
      %p54 = scmp.eq.s32.totalorder %s16, 1
      %p55 = scmp.ne.s32.totalorder %s50, %s52
      %p56 = scmp.eq.s32.totalorder %s16, 0
      %p57 = por %p55, %p56
      %p58 = scmp.ne.s32.totalorder %s50, %s52
      %p59 = scmp.eq.s32.totalorder %s21, 1
      %p60 = por %p58, %p59
      %p61 = scmp.ne.s32.totalorder %s52, %s53
      %p62 = scmp.eq.s32.totalorder %s21, 0
      %p63 = por %p61, %p62
      %p64 = scmp.ne.s32.totalorder %s52, %s53
      %p65 = scmp.eq.s32.totalorder %s22, 1
      %p66 = por %p64, %p65
      %p68 = scmp.ne.s32.totalorder %s53, %s67
      %p69 = scmp.eq.s32.totalorder %s22, 0
      %p70 = por %p68, %p69
      %s72 = sadd.s32 %s71, 1
      %p75 = scmp.eq.s32.totalorder %s16, 1
      %p76 = scmp.ne.s32.totalorder %s71, %s73
      %p77 = scmp.eq.s32.totalorder %s16, 0
      %p78 = por %p76, %p77
      %p79 = scmp.ne.s32.totalorder %s71, %s73
      %p80 = scmp.eq.s32.totalorder %s21, 1
      %p81 = por %p79, %p80
      %p82 = scmp.ne.s32.totalorder %s73, %s74
      %p83 = scmp.eq.s32.totalorder %s21, 0
      %p84 = por %p82, %p83
      %p85 = scmp.ne.s32.totalorder %s73, %s74
      %p86 = scmp.eq.s32.totalorder %s22, 1
      %p87 = por %p85, %p86
      %p89 = scmp.ne.s32.totalorder %s74, %s88
      %p90 = scmp.eq.s32.totalorder %s22, 0
      %p91 = por %p89, %p90
      %s93 = sadd.s32 %s92, 1
      %p96 = scmp.eq.s32.totalorder %s16, 1
      %p97 = scmp.ne.s32.totalorder %s92, %s94
      %p98 = scmp.eq.s32.totalorder %s16, 0
      %p99 = por %p97, %p98
      %p100 = scmp.ne.s32.totalorder %s92, %s94
      %p101 = scmp.eq.s32.totalorder %s21, 1
      %p102 = por %p100, %p101
      %p103 = scmp.ne.s32.totalorder %s94, %s95
      %p104 = scmp.eq.s32.totalorder %s21, 0
      %p105 = por %p103, %p104
      %p106 = scmp.ne.s32.totalorder %s94, %s95
      %p107 = scmp.eq.s32.totalorder %s22, 1
      %p108 = por %p106, %p107
      %p110 = scmp.ne.s32.totalorder %s95, %s109
      %p111 = scmp.eq.s32.totalorder %s22, 0
      %p112 = por %p110, %p111
      %s114 = sadd.s32 %s113, 1
      %p117 = scmp.eq.s32.totalorder %s16, 1
      %p118 = scmp.ne.s32.totalorder %s113, %s115
      %p119 = scmp.eq.s32.totalorder %s16, 0
      %p120 = por %p118, %p119
      %p121 = scmp.ne.s32.totalorder %s113, %s115
      %p122 = scmp.eq.s32.totalorder %s21, 1
      %p123 = por %p121, %p122
      %p124 = scmp.ne.s32.totalorder %s115, %s116
      %p125 = scmp.eq.s32.totalorder %s21, 0
      %p126 = por %p124, %p125
      %p127 = scmp.ne.s32.totalorder %s115, %s116
      %p128 = scmp.eq.s32.totalorder %s22, 1
      %p129 = por %p127, %p128
      %p131 = scmp.ne.s32.totalorder %s116, %s130
      %p132 = scmp.eq.s32.totalorder %s22, 0
      %p133 = por %p131, %p132
      %s135 = sadd.s32 %s134, 1
      %p138 = scmp.eq.s32.totalorder %s16, 1
      %p139 = scmp.ne.s32.totalorder %s134, %s136
      %p140 = scmp.eq.s32.totalorder %s16, 0
      %p141 = por %p139, %p140
      %p142 = scmp.ne.s32.totalorder %s134, %s136
      %p143 = scmp.eq.s32.totalorder %s21, 1
      %p144 = por %p142, %p143
      %p145 = scmp.ne.s32.totalorder %s136, %s137
      %p146 = scmp.eq.s32.totalorder %s21, 0
      %p147 = por %p145, %p146
      %p148 = scmp.ne.s32.totalorder %s136, %s137
      %p149 = scmp.eq.s32.totalorder %s22, 1
      %p150 = por %p148, %p149
      %p152 = scmp.ne.s32.totalorder %s137, %s151
      %p153 = scmp.eq.s32.totalorder %s22, 0
      %p154 = por %p152, %p153
      %s156 = sadd.s32 %s155, 1
      %p159 = scmp.eq.s32.totalorder %s16, 1
      %p160 = scmp.ne.s32.totalorder %s155, %s157
      %p161 = scmp.eq.s32.totalorder %s16, 0
      %p162 = por %p160, %p161
      %p163 = scmp.ne.s32.totalorder %s155, %s157
      %p164 = scmp.eq.s32.totalorder %s21, 1
      %p165 = por %p163, %p164
      %p166 = scmp.ne.s32.totalorder %s157, %s158
      %p167 = scmp.eq.s32.totalorder %s21, 0
      %p168 = por %p166, %p167
      %p169 = scmp.ne.s32.totalorder %s157, %s158
      %p170 = scmp.eq.s32.totalorder %s22, 1
      %p171 = por %p169, %p170
      %p173 = scmp.ne.s32.totalorder %s158, %s172
      %p174 = scmp.eq.s32.totalorder %s22, 0
      %p175 = por %p173, %p174
      %s176 = ssub.s32 %s16, %s23
      %p177 = scmp.eq.s32.totalorder %s176, 0
      %s179 = sadd.s32 %s178, 1
      %s180 = scalar_select %p177, %s178, %s179
      %p183 = pneg %p177
      %p184 = scmp.eq.s32.totalorder %s16, 1
      %p185 = por %p183, %p184
      %p186 = scmp.ne.s32.totalorder %s178, %s181
      %p187 = scmp.eq.s32.totalorder %s16, 0
      %p188 = por %p186, %p187
      %p189 = scmp.ne.s32.totalorder %s178, %s181
      %p190 = scmp.eq.s32.totalorder %s21, 1
      %p191 = por %p189, %p190
      %p192 = scmp.ne.s32.totalorder %s181, %s182
      %p193 = scmp.eq.s32.totalorder %s21, 0
      %p194 = por %p192, %p193
      %p195 = scmp.ne.s32.totalorder %s181, %s182
      %p196 = scmp.eq.s32.totalorder %s22, 1
      %p197 = por %p195, %p196
      %p199 = scmp.ne.s32.totalorder %s182, %s198
      %p200 = scmp.eq.s32.totalorder %s22, 0
      %p201 = por %p199, %p200
      %p202 = scmp.le.s32.totalorder 1, %s16
      %p203 = scmp.lt.s32.totalorder %s16, 3
      %p204 = pnand %p202, %p203
      %p205 = pneg %p204
      // Predicated region
      $region9: #{_forward_impl.1} parent=5 // pred_check
        _
      $region10: #{_forward_impl.1} parent=5 // pred_check_branch
        %207 = sbr.rel (%p204) target = $region12
      $region11: #{_forward_impl.1} parent=5 // pred_region
        %s208 = ssub.s32 %s16, 1
        // Predicated region
        $region13: #{_forward_impl.1} parent=11 // pred_check
          %p209 = pneg %p63
        $region14: #{_forward_impl.1} parent=11 // pred_check_branch
          %211 = sbr.rel (%p209) target = $region16
        $region15: #{_forward_impl.1} parent=11 // pred_region
          _
        $region16: #{_forward_impl.1} parent=11 // pred_fallthru
          _
        // Predicated region
        $region17: #{_forward_impl.1} parent=11 // pred_check
          %p212 = pneg %p84
        $region18: #{_forward_impl.1} parent=11 // pred_check_branch
          %214 = sbr.rel (%p212) target = $region20
        $region19: #{_forward_impl.1} parent=11 // pred_region
          _
        $region20: #{_forward_impl.1} parent=11 // pred_fallthru
          _
        // Predicated region
        $region21: #{_forward_impl.1} parent=11 // pred_check
          %p215 = pneg %p105
        $region22: #{_forward_impl.1} parent=11 // pred_check_branch
          %217 = sbr.rel (%p215) target = $region24
        $region23: #{_forward_impl.1} parent=11 // pred_region
          _
        $region24: #{_forward_impl.1} parent=11 // pred_fallthru
          _
        // Predicated region
        $region25: #{_forward_impl.1} parent=11 // pred_check
          %p218 = pneg %p126
        $region26: #{_forward_impl.1} parent=11 // pred_check_branch
          %220 = sbr.rel (%p218) target = $region28
        $region27: #{_forward_impl.1} parent=11 // pred_region
          _
        $region28: #{_forward_impl.1} parent=11 // pred_fallthru
          _
        // Predicated region
        $region29: #{_forward_impl.1} parent=11 // pred_check
          %p221 = pneg %p147
        $region30: #{_forward_impl.1} parent=11 // pred_check_branch
          %223 = sbr.rel (%p221) target = $region32
        $region31: #{_forward_impl.1} parent=11 // pred_region
          _
        $region32: #{_forward_impl.1} parent=11 // pred_fallthru
          _
        // Predicated region
        $region33: #{_forward_impl.1} parent=11 // pred_check
          %p224 = pneg %p168
        $region34: #{_forward_impl.1} parent=11 // pred_check_branch
          %226 = sbr.rel (%p224) target = $region36
        $region35: #{_forward_impl.1} parent=11 // pred_region
          _
        $region36: #{_forward_impl.1} parent=11 // pred_fallthru
          _
      $region12: #{_forward_impl.1} parent=5 // pred_fallthru
        _
      %p227 = scmp.lt.s32.totalorder %s16, 2
      // Predicated region
      $region37: #{_forward_impl.1} parent=5 // pred_check
        %p228 = pneg %p227
      $region38: #{_forward_impl.1} parent=5 // pred_check_branch
        %230 = sbr.rel (%p228) target = $region40
      $region39: #{_forward_impl.1} parent=5 // pred_region
        // Predicated region
        $region41: #{_forward_impl.1} parent=39 // pred_check
          %p231 = pneg %p36
        $region42: #{_forward_impl.1} parent=39 // pred_check_branch
          %233 = sbr.rel (%p231) target = $region44
        $region43: #{_forward_impl.1} parent=39 // pred_region
          %s234 = smul.u32 32, %s16
          %p235 = scmp.lt.s32.totalorder %s234, 63
          %s236 = scalar_select %p235, %s234, 63
          %s237 = smul.addr %s236, 8
          %s238 = scalar_lea.vmem %s0, %s237
          %s239 = smul.u32 32, %s16
        $region44: #{_forward_impl.1} parent=39 // pred_fallthru
          _
      $region40: #{_forward_impl.1} parent=5 // pred_fallthru
        _
      %p240 = scmp.le.s32.totalorder 1, %s16
      %p241 = scmp.lt.s32.totalorder %s16, 3
      %p242 = pnand %p240, %p241
      %p243 = pneg %p242
      // Predicated region
      $region45: #{_forward_impl.1} parent=5 // pred_check
        _
      $region46: #{_forward_impl.1} parent=5 // pred_check_branch
        %245 = sbr.rel (%p242) target = $region48
      $region47: #{_forward_impl.1} parent=5 // pred_region
        %s246 = ssub.s32 %s16, 1
        %s247 = smul.u32 32, %s21
        %p248 = scmp.lt.s32.totalorder %s247, 63
        %s249 = scalar_select %p248, %s247, 63
        %s250 = smul.addr %s249, 8
        %s251 = scalar_lea.vmem %s0, %s250
        %p252 = pneg %p42
        %p253 = pneg %p39
        %p254 = pneg %p63
        %p255 = pneg %p60
        %p256 = pneg %p84
        %p257 = pneg %p81
        %p258 = pneg %p105
        %p259 = pneg %p102
        %p260 = pneg %p126
        %p261 = pneg %p123
        %p262 = pneg %p147
        %p263 = pneg %p144
        %p264 = pneg %p168
        %p265 = pneg %p165
        %p266 = pneg %p194
        %p267 = pneg %p191
        %s268 = sand.u32 %s181, 1
        %s269 = scalar_lea.sflag [#allocation3], %s268
        %s270 = sand.u32 %s181, 1
        %s271 = smul.addr %s270, 4
        %s272 = scalar_lea.vmem [#allocation2], %s271
        %s273 = smul.u32 32, %s21
        %p274 = scmp.lt.s32.totalorder %s273, 63
        %s275 = scalar_select %p274, %s273, 63
        %s276 = smul.addr %s275, 8
        %s277 = scalar_lea.vmem %s0, %s276
        %s278 = smul.u32 32, %s21
        %s279 = smul.u32 2, %s21
        %v281 = vld [vmem:[%s277] sm:$0xff]
        %v282 = vld [vmem:[%s277 + $0x8] sm:$0xff]
        %v283 = vld [vmem:[%s277 + $0x10] sm:$0xff]
        %v284 = vld [vmem:[%s277 + $0x18] sm:$0xff]
        %v285 = vld [vmem:[%s277 + $0x20] sm:$0xff]
        %v286 = vld [vmem:[%s277 + $0x28] sm:$0xff]
        %v287 = vld [vmem:[%s277 + $0x30] sm:$0xff]
        %v288 = vld [vmem:[%s277 + $0x38] sm:$0xff]
        %v289 = vld [vmem:[%s277 + $0x40] sm:$0xff]
        %v290 = vld [vmem:[%s277 + $0x48] sm:$0xff]
        %v291 = vld [vmem:[%s277 + $0x50] sm:$0xff]
        %v292 = vld [vmem:[%s277 + $0x58] sm:$0xff]
        %v293 = vld [vmem:[%s277 + $0x60] sm:$0xff]
        %v294 = vld [vmem:[%s277 + $0x68] sm:$0xff]
        %v295 = vld [vmem:[%s277 + $0x70] sm:$0xff]
        %v296 = vld [vmem:[%s277 + $0x78] sm:$0xff]
        %v297 = vld [vmem:[%s277 + $0x80] sm:$0xff]
        %v298 = vld [vmem:[%s277 + $0x88] sm:$0xff]
        %v299 = vld [vmem:[%s277 + $0x90] sm:$0xff]
        %v300 = vld [vmem:[%s277 + $0x98] sm:$0xff]
        %v301 = vld [vmem:[%s277 + $0xa0] sm:$0xff]
        %v302 = vld [vmem:[%s277 + $0xa8] sm:$0xff]
        %v303 = vld [vmem:[%s277 + $0xb0] sm:$0xff]
        %v304 = vld [vmem:[%s277 + $0xb8] sm:$0xff]
        %v305 = vld [vmem:[%s277 + $0xc0] sm:$0xff]
        %v306 = vld [vmem:[%s277 + $0xc8] sm:$0xff]
        %v307 = vld [vmem:[%s277 + $0xd0] sm:$0xff]
        %v308 = vld [vmem:[%s277 + $0xd8] sm:$0xff]
        %v309 = vld [vmem:[%s277 + $0xe0] sm:$0xff]
        %v310 = vld [vmem:[%s277 + $0xe8] sm:$0xff]
        %v311 = vld [vmem:[%s277 + $0xf0] sm:$0xff]
        %v312 = vld [vmem:[%s277 + $0xf8] sm:$0xff]
        %v313 = vpack.c.bf16 %v282, %v281
        %v314 = vpack.c.bf16 %v284, %v283
        %v315 = vpack.c.bf16 %v286, %v285
        %v316 = vpack.c.bf16 %v288, %v287
        %v317 = vpack.c.bf16 %v290, %v289
        %v318 = vpack.c.bf16 %v292, %v291
        %v319 = vpack.c.bf16 %v294, %v293
        %v320 = vpack.c.bf16 %v296, %v295
        %v321 = vpack.c.bf16 %v298, %v297
        %v322 = vpack.c.bf16 %v300, %v299
        %v323 = vpack.c.bf16 %v302, %v301
        %v324 = vpack.c.bf16 %v304, %v303
        %v325 = vpack.c.bf16 %v306, %v305
        %v326 = vpack.c.bf16 %v308, %v307
        %v327 = vpack.c.bf16 %v310, %v309
        %v328 = vpack.c.bf16 %v312, %v311
        %v329 = vld [vmem:[%s1] sm:$0xf]
        %v330 = vld [vmem:[%s1 + $0x4] sm:$0xf]
        %v331 = vld [vmem:[%s1 + $0x8] sm:$0xf]
        %v332 = vld [vmem:[%s1 + $0xc] sm:$0xf]
        %v333 = vld [vmem:[%s2] sm:$0x1]
        %v335 = vlaneseq
        %v336 = vshrl.u32 %v335, 7
        %v337 = vsub.s32 0, %v336
        %v338 = vrot.slane %v333, %v337
        %v344 = vunpack.c.l.b16 %v329
        %v345 = vunpack.c.l.b16 %v330
        %v346 = vunpack.c.l.b16 %v331
        %v347 = vunpack.c.l.b16 %v332
        %v348 = vpack.c.b16 %v345, %v344
        %v349 = vpack.c.b16 %v347, %v346
        %vm352 = vcmask 261120
        %v354 = vsel %vm352, %v313, 0
        %v357 = vsel %vm352, %v314, 0
        %v360 = vsel %vm352, %v315, 0
        %v363 = vsel %vm352, %v316, 0
        %v366 = vsel %vm352, %v317, 0
        %v369 = vsel %vm352, %v318, 0
        %v372 = vsel %vm352, %v319, 0
        %v375 = vsel %vm352, %v320, 0
        %v378 = vsel %vm352, %v321, 0
        %v381 = vsel %vm352, %v322, 0
        %v384 = vsel %vm352, %v323, 0
        %v387 = vsel %vm352, %v324, 0
        %v390 = vsel %vm352, %v325, 0
        %v393 = vsel %vm352, %v326, 0
        %v396 = vsel %vm352, %v327, 0
        %v399 = vsel %vm352, %v328, 0
        %401 = vmatprep.subr.bf16.mxu0 0
        %402 = vmatpush1.bf16.msra.mxu0 %v348
        %403 = vmatprep.subr.bf16.mxu0 0
        %404 = vmatpush1.bf16.msra.mxu0 %v349
        %405 = vmatprep.subr.bf16.mxu0 0
        %406 = vmatpush1.bf16.msra.mxu0 0
        %407 = vmatprep.subr.bf16.mxu0 0
        %408 = vmatpush1.bf16.msra.mxu0 0
        %409 = vmatprep.subr.bf16.mxu0 0
        %410 = vmatpush1.bf16.msra.mxu0 0
        %411 = vmatprep.subr.bf16.mxu0 0
        %412 = vmatpush1.bf16.msra.mxu0 0
        %413 = vmatprep.subr.bf16.mxu0 0
        %414 = vmatpush1.bf16.msra.mxu0 0
        %415 = vmatprep.subr.bf16.mxu0 0
        %416 = vmatpush1.bf16.msra.mxu0 0
        %417 = vmatprep.subr.bf16.mxu0 0
        %418 = vmatpush1.bf16.msra.mxu0 0
        %419 = vmatprep.subr.bf16.mxu0 0
        %420 = vmatpush1.bf16.msra.mxu0 0
        %421 = vmatprep.subr.bf16.mxu0 0
        %422 = vmatpush1.bf16.msra.mxu0 0
        %423 = vmatprep.subr.bf16.mxu0 0
        %424 = vmatpush1.bf16.msra.mxu0 0
        %425 = vmatprep.subr.bf16.mxu0 0
        %426 = vmatpush1.bf16.msra.mxu0 0
        %427 = vmatprep.subr.bf16.mxu0 0
        %428 = vmatpush1.bf16.msra.mxu0 0
        %429 = vmatprep.subr.bf16.mxu0 0
        %430 = vmatpush1.bf16.msra.mxu0 0
        %431 = vmatprep.subr.bf16.mxu0 0
        %432 = vmatpush1.bf16.msra.mxu0 0
        %433 = vmatprep.mubr.bf16.mxu0 0
        %434 = vmatmul.mubr.bf16.gmra.mrb[0].mxu0 %v354
        %v435 = vpop.f32.mrb[0].mxu0
        %v436 = vadd.f32 %v338, %v435
        %v437 = vpop.f32.mrb[0].mxu0
        %v438 = vpop.f32.mrb[0].mxu0
        %v439 = vadd.f32 %v338, %v438
        %v440 = vpop.f32.mrb[0].mxu0
        %441 = vmatprep.mubr.bf16.mxu0 0
        %442 = vmatmul.mubr.bf16.gmra.mrb[0].mxu0 %v357
        %v443 = vpop.f32.mrb[0].mxu0
        %v444 = vadd.f32 %v338, %v443
        %v445 = vpop.f32.mrb[0].mxu0
        %v446 = vpop.f32.mrb[0].mxu0
        %v447 = vadd.f32 %v338, %v446
        %v448 = vpop.f32.mrb[0].mxu0
        %449 = vmatprep.mubr.bf16.mxu0 0
        %450 = vmatmul.mubr.bf16.gmra.mrb[0].mxu0 %v360
        %v451 = vpop.f32.mrb[0].mxu0
        %v452 = vadd.f32 %v338, %v451
        %v453 = vpop.f32.mrb[0].mxu0
        %v454 = vpop.f32.mrb[0].mxu0
        %v455 = vadd.f32 %v338, %v454
        %v456 = vpop.f32.mrb[0].mxu0
        %457 = vmatprep.mubr.bf16.mxu0 0
        %458 = vmatmul.mubr.bf16.gmra.mrb[0].mxu0 %v363
        %v459 = vpop.f32.mrb[0].mxu0
        %v460 = vadd.f32 %v338, %v459
        %v461 = vpop.f32.mrb[0].mxu0
        %v462 = vpop.f32.mrb[0].mxu0
        %v463 = vadd.f32 %v338, %v462
        %v464 = vpop.f32.mrb[0].mxu0
        %465 = vmatprep.mubr.bf16.mxu0 0
        %466 = vmatmul.mubr.bf16.gmra.mrb[0].mxu0 %v366
        %v467 = vpop.f32.mrb[0].mxu0
        %v468 = vadd.f32 %v338, %v467
        %v469 = vpop.f32.mrb[0].mxu0
        %v470 = vpop.f32.mrb[0].mxu0
        %v471 = vadd.f32 %v338, %v470
        %v472 = vpop.f32.mrb[0].mxu0
        %473 = vmatprep.mubr.bf16.mxu0 0
        %474 = vmatmul.mubr.bf16.gmra.mrb[0].mxu0 %v369
        %v475 = vpop.f32.mrb[0].mxu0
        %v476 = vadd.f32 %v338, %v475
        %v477 = vpop.f32.mrb[0].mxu0
        %v478 = vpop.f32.mrb[0].mxu0
        %v479 = vadd.f32 %v338, %v478
        %v480 = vpop.f32.mrb[0].mxu0
        %481 = vmatprep.mubr.bf16.mxu0 0
        %482 = vmatmul.mubr.bf16.gmra.mrb[0].mxu0 %v372
        %v483 = vpop.f32.mrb[0].mxu0
        %v484 = vadd.f32 %v338, %v483
        %v485 = vpop.f32.mrb[0].mxu0
        %v486 = vpop.f32.mrb[0].mxu0
        %v487 = vadd.f32 %v338, %v486
        %v488 = vpop.f32.mrb[0].mxu0
        %489 = vmatprep.mubr.bf16.mxu0 0
        %490 = vmatmul.mubr.bf16.gmra.mrb[0].mxu0 %v375
        %v491 = vpop.f32.mrb[0].mxu0
        %v492 = vadd.f32 %v338, %v491
        %v493 = vpop.f32.mrb[0].mxu0
        %v494 = vpop.f32.mrb[0].mxu0
        %v495 = vadd.f32 %v338, %v494
        %v496 = vpop.f32.mrb[0].mxu0
        %497 = vmatprep.mubr.bf16.mxu0 0
        %498 = vmatmul.mubr.bf16.gmra.mrb[0].mxu0 %v378
        %v499 = vpop.f32.mrb[0].mxu0
        %v500 = vadd.f32 %v338, %v499
        %v501 = vpop.f32.mrb[0].mxu0
        %v502 = vpop.f32.mrb[0].mxu0
        %v503 = vadd.f32 %v338, %v502
        %v504 = vpop.f32.mrb[0].mxu0
        %505 = vmatprep.mubr.bf16.mxu0 0
        %506 = vmatmul.mubr.bf16.gmra.mrb[0].mxu0 %v381
        %v507 = vpop.f32.mrb[0].mxu0
        %v508 = vadd.f32 %v338, %v507
        %v509 = vpop.f32.mrb[0].mxu0
        %v510 = vpop.f32.mrb[0].mxu0
        %v511 = vadd.f32 %v338, %v510
        %v512 = vpop.f32.mrb[0].mxu0
        %513 = vmatprep.mubr.bf16.mxu0 0
        %514 = vmatmul.mubr.bf16.gmra.mrb[0].mxu0 %v384
        %v515 = vpop.f32.mrb[0].mxu0
        %v516 = vadd.f32 %v338, %v515
        %v517 = vpop.f32.mrb[0].mxu0
        %v518 = vpop.f32.mrb[0].mxu0
        %v519 = vadd.f32 %v338, %v518
        %v520 = vpop.f32.mrb[0].mxu0
        %521 = vmatprep.mubr.bf16.mxu0 0
        %522 = vmatmul.mubr.bf16.gmra.mrb[0].mxu0 %v387
        %v523 = vpop.f32.mrb[0].mxu0
        %v524 = vadd.f32 %v338, %v523
        %v525 = vpop.f32.mrb[0].mxu0
        %v526 = vpop.f32.mrb[0].mxu0
        %v527 = vadd.f32 %v338, %v526
        %v528 = vpop.f32.mrb[0].mxu0
        %529 = vmatprep.mubr.bf16.mxu0 0
        %530 = vmatmul.mubr.bf16.gmra.mrb[0].mxu0 %v390
        %v531 = vpop.f32.mrb[0].mxu0
        %v532 = vadd.f32 %v338, %v531
        %v533 = vpop.f32.mrb[0].mxu0
        %v534 = vpop.f32.mrb[0].mxu0
        %v535 = vadd.f32 %v338, %v534
        %v536 = vpop.f32.mrb[0].mxu0
        %537 = vmatprep.mubr.bf16.mxu0 0
        %538 = vmatmul.mubr.bf16.gmra.mrb[0].mxu0 %v393
        %v539 = vpop.f32.mrb[0].mxu0
        %v540 = vadd.f32 %v338, %v539
        %v541 = vpop.f32.mrb[0].mxu0
        %v542 = vpop.f32.mrb[0].mxu0
        %v543 = vadd.f32 %v338, %v542
        %v544 = vpop.f32.mrb[0].mxu0
        %545 = vmatprep.mubr.bf16.mxu0 0
        %546 = vmatmul.mubr.bf16.gmra.mrb[0].mxu0 %v396
        %v547 = vpop.f32.mrb[0].mxu0
        %v548 = vadd.f32 %v338, %v547
        %v549 = vpop.f32.mrb[0].mxu0
        %v550 = vpop.f32.mrb[0].mxu0
        %v551 = vadd.f32 %v338, %v550
        %v552 = vpop.f32.mrb[0].mxu0
        %553 = vmatprep.mubr.bf16.mxu0 0
        %554 = vmatmul.mubr.bf16.gmra.mrb[0].mxu0 %v399
        %v555 = vpop.f32.mrb[0].mxu0
        %v556 = vadd.f32 %v338, %v555
        %v557 = vpop.f32.mrb[0].mxu0
        %v558 = vpop.f32.mrb[0].mxu0
        %v559 = vadd.f32 %v338, %v558
        %v560 = vpop.f32.mrb[0].mxu0
        %561 = vdwg.mxu0
        %v562 = vmax.f32 %v436, 0.0
        %v563 = vmax.f32 %v439, 0.0
        %v564 = vmax.f32 %v444, 0.0
        %v565 = vmax.f32 %v447, 0.0
        %v566 = vmax.f32 %v452, 0.0
        %v567 = vmax.f32 %v455, 0.0
        %v568 = vmax.f32 %v460, 0.0
        %v569 = vmax.f32 %v463, 0.0
        %v570 = vmax.f32 %v468, 0.0
        %v571 = vmax.f32 %v471, 0.0
        %v572 = vmax.f32 %v476, 0.0
        %v573 = vmax.f32 %v479, 0.0
        %v574 = vmax.f32 %v484, 0.0
        %v575 = vmax.f32 %v487, 0.0
        %v576 = vmax.f32 %v492, 0.0
        %v577 = vmax.f32 %v495, 0.0
        %v578 = vmax.f32 %v500, 0.0
        %v579 = vmax.f32 %v503, 0.0
        %v580 = vmax.f32 %v508, 0.0
        %v581 = vmax.f32 %v511, 0.0
        %v582 = vmax.f32 %v516, 0.0
        %v583 = vmax.f32 %v519, 0.0
        %v584 = vmax.f32 %v524, 0.0
        %v585 = vmax.f32 %v527, 0.0
        %v586 = vmax.f32 %v532, 0.0
        %v587 = vmax.f32 %v535, 0.0
        %v588 = vmax.f32 %v540, 0.0
        %v589 = vmax.f32 %v543, 0.0
        %v590 = vmax.f32 %v548, 0.0
        %v591 = vmax.f32 %v551, 0.0
        %v592 = vmax.f32 %v556, 0.0
        %v593 = vmax.f32 %v559, 0.0
        %v594 = vpack.c.bf16 %v563, %v562
        %v595 = vpack.c.bf16 %v565, %v564
        %v596 = vpack.c.bf16 %v567, %v566
        %v597 = vpack.c.bf16 %v569, %v568
        %v598 = vpack.c.bf16 %v571, %v570
        %v599 = vpack.c.bf16 %v573, %v572
        %v600 = vpack.c.bf16 %v575, %v574
        %v601 = vpack.c.bf16 %v577, %v576
        %v602 = vpack.c.bf16 %v579, %v578
        %v603 = vpack.c.bf16 %v581, %v580
        %v604 = vpack.c.bf16 %v583, %v582
        %v605 = vpack.c.bf16 %v585, %v584
        %v606 = vpack.c.bf16 %v587, %v586
        %v607 = vpack.c.bf16 %v589, %v588
        %v608 = vpack.c.bf16 %v591, %v590
        %v609 = vpack.c.bf16 %v593, %v592
        %v610 = vld [vmem:[%s3] sm:$0xf]
        %v611 = vld [vmem:[%s3 + $0x4] sm:$0xf]
        %v612 = vld [vmem:[%s3 + $0x8] sm:$0xf]
        %v613 = vld [vmem:[%s3 + $0xc] sm:$0xf]
        %v614 = vld [vmem:[%s3 + $0x10] sm:$0xf]
        %v615 = vld [vmem:[%s3 + $0x14] sm:$0xf]
        %v616 = vld [vmem:[%s3 + $0x18] sm:$0xf]
        %v617 = vld [vmem:[%s3 + $0x1c] sm:$0xf]
        %v618 = vld [vmem:[%s4] sm:$0x1]
        %v620 = vlaneseq
        %v621 = vshrl.u32 %v620, 7
        %v622 = vsub.s32 0, %v621
        %v623 = vrot.slane %v618, %v622
        %v633 = vunpack.c.l.b16 %v610
        %v634 = vunpack.c.l.b16 %v611
        %v635 = vunpack.c.l.b16 %v612
        %v636 = vunpack.c.l.b16 %v613
        %v637 = vunpack.c.l.b16 %v614
        %v638 = vunpack.c.l.b16 %v615
        %v639 = vunpack.c.l.b16 %v616
        %v640 = vunpack.c.l.b16 %v617
        %v641 = vpack.c.b16 %v634, %v633
        %v642 = vpack.c.b16 %v636, %v635
        %v643 = vpack.c.b16 %v638, %v637
        %v644 = vpack.c.b16 %v640, %v639
        %vm649 = vcmask 523264
        %v651 = vsel %vm649, %v594, 0
        %v654 = vsel %vm649, %v595, 0
        %v657 = vsel %vm649, %v596, 0
        %v660 = vsel %vm649, %v597, 0
        %v663 = vsel %vm649, %v598, 0
        %v666 = vsel %vm649, %v599, 0
        %v669 = vsel %vm649, %v600, 0
        %v672 = vsel %vm649, %v601, 0
        %v675 = vsel %vm649, %v602, 0
        %v678 = vsel %vm649, %v603, 0
        %v681 = vsel %vm649, %v604, 0
        %v684 = vsel %vm649, %v605, 0
        %v687 = vsel %vm649, %v606, 0
        %v690 = vsel %vm649, %v607, 0
        %v693 = vsel %vm649, %v608, 0
        %v696 = vsel %vm649, %v609, 0
        %698 = vmatprep.subr.bf16.mxu0 0
        %699 = vmatpush1.bf16.msra.mxu0 %v641
        %700 = vmatprep.subr.bf16.mxu0 0
        %701 = vmatpush1.bf16.msra.mxu0 %v642
        %702 = vmatprep.subr.bf16.mxu0 0
        %703 = vmatpush1.bf16.msra.mxu0 %v643
        %704 = vmatprep.subr.bf16.mxu0 0
        %705 = vmatpush1.bf16.msra.mxu0 %v644
        %706 = vmatprep.subr.bf16.mxu0 0
        %707 = vmatpush1.bf16.msra.mxu0 0
        %708 = vmatprep.subr.bf16.mxu0 0
        %709 = vmatpush1.bf16.msra.mxu0 0
        %710 = vmatprep.subr.bf16.mxu0 0
        %711 = vmatpush1.bf16.msra.mxu0 0
        %712 = vmatprep.subr.bf16.mxu0 0
        %713 = vmatpush1.bf16.msra.mxu0 0
        %714 = vmatprep.subr.bf16.mxu0 0
        %715 = vmatpush1.bf16.msra.mxu0 0
        %716 = vmatprep.subr.bf16.mxu0 0
        %717 = vmatpush1.bf16.msra.mxu0 0
        %718 = vmatprep.subr.bf16.mxu0 0
        %719 = vmatpush1.bf16.msra.mxu0 0
        %720 = vmatprep.subr.bf16.mxu0 0
        %721 = vmatpush1.bf16.msra.mxu0 0
        %722 = vmatprep.subr.bf16.mxu0 0
        %723 = vmatpush1.bf16.msra.mxu0 0
        %724 = vmatprep.subr.bf16.mxu0 0
        %725 = vmatpush1.bf16.msra.mxu0 0
        %726 = vmatprep.subr.bf16.mxu0 0
        %727 = vmatpush1.bf16.msra.mxu0 0
        %728 = vmatprep.subr.bf16.mxu0 0
        %729 = vmatpush1.bf16.msra.mxu0 0
        %730 = vmatprep.mubr.bf16.mxu0 0
        %731 = vmatmul.mubr.bf16.gmra.mrb[0].mxu0 %v651
        %v732 = vpop.f32.mrb[0].mxu0
        %v733 = vadd.f32 %v623, %v732
        %v734 = vpop.f32.mrb[0].mxu0
        %v735 = vpop.f32.mrb[0].mxu0
        %v736 = vadd.f32 %v623, %v735
        %v737 = vpop.f32.mrb[0].mxu0
        %738 = vmatprep.mubr.bf16.mxu0 0
        %739 = vmatmul.mubr.bf16.gmra.mrb[0].mxu0 %v654
        %v740 = vpop.f32.mrb[0].mxu0
        %v741 = vadd.f32 %v623, %v740
        %v742 = vpop.f32.mrb[0].mxu0
        %v743 = vpop.f32.mrb[0].mxu0
        %v744 = vadd.f32 %v623, %v743
        %v745 = vpop.f32.mrb[0].mxu0
        %746 = vmatprep.mubr.bf16.mxu0 0
        %747 = vmatmul.mubr.bf16.gmra.mrb[0].mxu0 %v657
        %v748 = vpop.f32.mrb[0].mxu0
        %v749 = vadd.f32 %v623, %v748
        %v750 = vpop.f32.mrb[0].mxu0
        %v751 = vpop.f32.mrb[0].mxu0
        %v752 = vadd.f32 %v623, %v751
        %v753 = vpop.f32.mrb[0].mxu0
        %754 = vmatprep.mubr.bf16.mxu0 0
        %755 = vmatmul.mubr.bf16.gmra.mrb[0].mxu0 %v660
        %v756 = vpop.f32.mrb[0].mxu0
        %v757 = vadd.f32 %v623, %v756
        %v758 = vpop.f32.mrb[0].mxu0
        %v759 = vpop.f32.mrb[0].mxu0
        %v760 = vadd.f32 %v623, %v759
        %v761 = vpop.f32.mrb[0].mxu0
        %762 = vmatprep.mubr.bf16.mxu0 0
        %763 = vmatmul.mubr.bf16.gmra.mrb[0].mxu0 %v663
        %v764 = vpop.f32.mrb[0].mxu0
        %v765 = vadd.f32 %v623, %v764
        %v766 = vpop.f32.mrb[0].mxu0
        %v767 = vpop.f32.mrb[0].mxu0
        %v768 = vadd.f32 %v623, %v767
        %v769 = vpop.f32.mrb[0].mxu0
        %770 = vmatprep.mubr.bf16.mxu0 0
        %771 = vmatmul.mubr.bf16.gmra.mrb[0].mxu0 %v666
        %v772 = vpop.f32.mrb[0].mxu0
        %v773 = vadd.f32 %v623, %v772
        %v774 = vpop.f32.mrb[0].mxu0
        %v775 = vpop.f32.mrb[0].mxu0
        %v776 = vadd.f32 %v623, %v775
        %v777 = vpop.f32.mrb[0].mxu0
        %778 = vmatprep.mubr.bf16.mxu0 0
        %779 = vmatmul.mubr.bf16.gmra.mrb[0].mxu0 %v669
        %v780 = vpop.f32.mrb[0].mxu0
        %v781 = vadd.f32 %v623, %v780
        %v782 = vpop.f32.mrb[0].mxu0
        %v783 = vpop.f32.mrb[0].mxu0
        %v784 = vadd.f32 %v623, %v783
        %v785 = vpop.f32.mrb[0].mxu0
        %786 = vmatprep.mubr.bf16.mxu0 0
        %787 = vmatmul.mubr.bf16.gmra.mrb[0].mxu0 %v672
        %v788 = vpop.f32.mrb[0].mxu0
        %v789 = vadd.f32 %v623, %v788
        %v790 = vpop.f32.mrb[0].mxu0
        %v791 = vpop.f32.mrb[0].mxu0
        %v792 = vadd.f32 %v623, %v791
        %v793 = vpop.f32.mrb[0].mxu0
        %794 = vmatprep.mubr.bf16.mxu0 0
        %795 = vmatmul.mubr.bf16.gmra.mrb[0].mxu0 %v675
        %v796 = vpop.f32.mrb[0].mxu0
        %v797 = vadd.f32 %v623, %v796
        %v798 = vpop.f32.mrb[0].mxu0
        %v799 = vpop.f32.mrb[0].mxu0
        %v800 = vadd.f32 %v623, %v799
        %v801 = vpop.f32.mrb[0].mxu0
        %802 = vmatprep.mubr.bf16.mxu0 0
        %803 = vmatmul.mubr.bf16.gmra.mrb[0].mxu0 %v678
        %v804 = vpop.f32.mrb[0].mxu0
        %v805 = vadd.f32 %v623, %v804
        %v806 = vpop.f32.mrb[0].mxu0
        %v807 = vpop.f32.mrb[0].mxu0
        %v808 = vadd.f32 %v623, %v807
        %v809 = vpop.f32.mrb[0].mxu0
        %810 = vmatprep.mubr.bf16.mxu0 0
        %811 = vmatmul.mubr.bf16.gmra.mrb[0].mxu0 %v681
        %v812 = vpop.f32.mrb[0].mxu0
        %v813 = vadd.f32 %v623, %v812
        %v814 = vpop.f32.mrb[0].mxu0
        %v815 = vpop.f32.mrb[0].mxu0
        %v816 = vadd.f32 %v623, %v815
        %v817 = vpop.f32.mrb[0].mxu0
        %818 = vmatprep.mubr.bf16.mxu0 0
        %819 = vmatmul.mubr.bf16.gmra.mrb[0].mxu0 %v684
        %v820 = vpop.f32.mrb[0].mxu0
        %v821 = vadd.f32 %v623, %v820
        %v822 = vpop.f32.mrb[0].mxu0
        %v823 = vpop.f32.mrb[0].mxu0
        %v824 = vadd.f32 %v623, %v823
        %v825 = vpop.f32.mrb[0].mxu0
        %826 = vmatprep.mubr.bf16.mxu0 0
        %827 = vmatmul.mubr.bf16.gmra.mrb[0].mxu0 %v687
        %v828 = vpop.f32.mrb[0].mxu0
        %v829 = vadd.f32 %v623, %v828
        %v830 = vpop.f32.mrb[0].mxu0
        %v831 = vpop.f32.mrb[0].mxu0
        %v832 = vadd.f32 %v623, %v831
        %v833 = vpop.f32.mrb[0].mxu0
        %834 = vmatprep.mubr.bf16.mxu0 0
        %835 = vmatmul.mubr.bf16.gmra.mrb[0].mxu0 %v690
        %v836 = vpop.f32.mrb[0].mxu0
        %v837 = vadd.f32 %v623, %v836
        %v838 = vpop.f32.mrb[0].mxu0
        %v839 = vpop.f32.mrb[0].mxu0
        %v840 = vadd.f32 %v623, %v839
        %v841 = vpop.f32.mrb[0].mxu0
        %842 = vmatprep.mubr.bf16.mxu0 0
        %843 = vmatmul.mubr.bf16.gmra.mrb[0].mxu0 %v693
        %v844 = vpop.f32.mrb[0].mxu0
        %v845 = vadd.f32 %v623, %v844
        %v846 = vpop.f32.mrb[0].mxu0
        %v847 = vpop.f32.mrb[0].mxu0
        %v848 = vadd.f32 %v623, %v847
        %v849 = vpop.f32.mrb[0].mxu0
        %850 = vmatprep.mubr.bf16.mxu0 0
        %851 = vmatmul.mubr.bf16.gmra.mrb[0].mxu0 %v696
        %v852 = vpop.f32.mrb[0].mxu0
        %v853 = vadd.f32 %v623, %v852
        %v854 = vpop.f32.mrb[0].mxu0
        %v855 = vpop.f32.mrb[0].mxu0
        %v856 = vadd.f32 %v623, %v855
        %v857 = vpop.f32.mrb[0].mxu0
        %858 = vdwg.mxu0
        %v859 = vmax.f32 %v733, 0.0
        %v860 = vmax.f32 %v736, 0.0
        %v861 = vmax.f32 %v741, 0.0
        %v862 = vmax.f32 %v744, 0.0
        %v863 = vmax.f32 %v749, 0.0
        %v864 = vmax.f32 %v752, 0.0
        %v865 = vmax.f32 %v757, 0.0
        %v866 = vmax.f32 %v760, 0.0
        %v867 = vmax.f32 %v765, 0.0
        %v868 = vmax.f32 %v768, 0.0
        %v869 = vmax.f32 %v773, 0.0
        %v870 = vmax.f32 %v776, 0.0
        %v871 = vmax.f32 %v781, 0.0
        %v872 = vmax.f32 %v784, 0.0
        %v873 = vmax.f32 %v789, 0.0
        %v874 = vmax.f32 %v792, 0.0
        %v875 = vmax.f32 %v797, 0.0
        %v876 = vmax.f32 %v800, 0.0
        %v877 = vmax.f32 %v805, 0.0
        %v878 = vmax.f32 %v808, 0.0
        %v879 = vmax.f32 %v813, 0.0
        %v880 = vmax.f32 %v816, 0.0
        %v881 = vmax.f32 %v821, 0.0
        %v882 = vmax.f32 %v824, 0.0
        %v883 = vmax.f32 %v829, 0.0
        %v884 = vmax.f32 %v832, 0.0
        %v885 = vmax.f32 %v837, 0.0
        %v886 = vmax.f32 %v840, 0.0
        %v887 = vmax.f32 %v845, 0.0
        %v888 = vmax.f32 %v848, 0.0
        %v889 = vmax.f32 %v853, 0.0
        %v890 = vmax.f32 %v856, 0.0
        %v891 = vld [vmem:[%s5] sm:$0x1]
        %v892 = vpack.c.bf16 %v860, %v859
        %v893 = vpack.c.bf16 %v862, %v861
        %v894 = vpack.c.bf16 %v864, %v863
        %v895 = vpack.c.bf16 %v866, %v865
        %v896 = vpack.c.bf16 %v868, %v867
        %v897 = vpack.c.bf16 %v870, %v869
        %v898 = vpack.c.bf16 %v872, %v871
        %v899 = vpack.c.bf16 %v874, %v873
        %v900 = vpack.c.bf16 %v876, %v875
        %v901 = vpack.c.bf16 %v878, %v877
        %v902 = vpack.c.bf16 %v880, %v879
        %v903 = vpack.c.bf16 %v882, %v881
        %v904 = vpack.c.bf16 %v884, %v883
        %v905 = vpack.c.bf16 %v886, %v885
        %v906 = vpack.c.bf16 %v888, %v887
        %v907 = vpack.c.bf16 %v890, %v889
        %v908 = vld [vmem:[%s6] sm:$0x3]
        %910 = vset.pattern.permute.xlu0 0
        %911 = vperm.xlu0 %910, %v908
        %v912 = vpop.permute.xlu0 %911
        %v915 = vsel %vm352, %v891, 0
        %v918 = vsel %vm352, %v892, 0
        %v921 = vsel %vm352, %v893, 0
        %v924 = vsel %vm352, %v894, 0
        %v927 = vsel %vm352, %v895, 0
        %v930 = vsel %vm352, %v896, 0
        %v933 = vsel %vm352, %v897, 0
        %v936 = vsel %vm352, %v898, 0
        %v939 = vsel %vm352, %v899, 0
        %v942 = vsel %vm352, %v900, 0
        %v945 = vsel %vm352, %v901, 0
        %v948 = vsel %vm352, %v902, 0
        %v951 = vsel %vm352, %v903, 0
        %v954 = vsel %vm352, %v904, 0
        %v957 = vsel %vm352, %v905, 0
        %v960 = vsel %vm352, %v906, 0
        %v963 = vsel %vm352, %v907, 0
        %965 = vmatprep.subr.bf16.mxu0 0
        %966 = vmatpush1.bf16.xpose.msra.mxu0 %v918
        %967 = vmatprep.subr.bf16.mxu0 0
        %968 = vmatpush1.bf16.xpose.msra.mxu0 %v921
        %969 = vmatprep.subr.bf16.mxu0 0
        %970 = vmatpush1.bf16.xpose.msra.mxu0 %v924
        %971 = vmatprep.subr.bf16.mxu0 0
        %972 = vmatpush1.bf16.xpose.msra.mxu0 %v927
        %973 = vmatprep.subr.bf16.mxu0 0
        %974 = vmatpush1.bf16.xpose.msra.mxu0 %v930
        %975 = vmatprep.subr.bf16.mxu0 0
        %976 = vmatpush1.bf16.xpose.msra.mxu0 %v933
        %977 = vmatprep.subr.bf16.mxu0 0
        %978 = vmatpush1.bf16.xpose.msra.mxu0 %v936
        %979 = vmatprep.subr.bf16.mxu0 0
        %980 = vmatpush1.bf16.xpose.msra.mxu0 %v939
        %981 = vmatprep.subr.bf16.mxu0 0
        %982 = vmatpush1.bf16.xpose.msra.mxu0 %v942
        %983 = vmatprep.subr.bf16.mxu0 0
        %984 = vmatpush1.bf16.xpose.msra.mxu0 %v945
        %985 = vmatprep.subr.bf16.mxu0 0
        %986 = vmatpush1.bf16.xpose.msra.mxu0 %v948
        %987 = vmatprep.subr.bf16.mxu0 0
        %988 = vmatpush1.bf16.xpose.msra.mxu0 %v951
        %989 = vmatprep.subr.bf16.mxu0 0
        %990 = vmatpush1.bf16.xpose.msra.mxu0 %v954
        %991 = vmatprep.subr.bf16.mxu0 0
        %992 = vmatpush1.bf16.xpose.msra.mxu0 %v957
        %993 = vmatprep.subr.bf16.mxu0 0
        %994 = vmatpush1.bf16.xpose.msra.mxu0 %v960
        %995 = vmatprep.subr.bf16.mxu0 0
        %996 = vmatpush1.bf16.xpose.msra.mxu0 %v963
        %997 = vmatprep.mubr.bf16.mxu0 0
        %998 = vmatmul.mubr.bf16.gmra.mrb[0].mxu0 %v915
        %v999 = vpop.f32.mrb[0].mxu0
        %v1000 = vadd.f32 %v912, %v999
        %v1001 = vpop.f32.mrb[0].mxu0
        %v1002 = vadd.f32 %v912, %v1001
        %v1003 = vpop.f32.mrb[0].mxu0
        %v1004 = vpop.f32.mrb[0].mxu0
        %1005 = vdwg.mxu0
        %v1006 = vlaneseq
        %v1007 = vshrl.u32 %v1006, 7
        %vm1008 = vcmp.eq.s32.totalorder %v1007, 0
        %v1009 = vxor.u32 %v1000, 2147483648
        %v1010 = vxor.u32 %v1002, 2147483648
        %v1011 = vmul.f32 %v1009, 1.442695
        %v1012 = vpow.pop %v1011
        %v1013 = vmul.f32 %v1010, 1.442695
        %v1014 = vpow.pop %v1013
        %v1015 = vadd.f32 %v1012, 1.0
        %v1016 = vadd.f32 %v1014, 1.0
        %v1017 = vrcp.pop %v1015
        %v1018 = vmul.f32 1.0, %v1017
        %v1019 = vrcp.pop %v1016
        %v1020 = vmul.f32 1.0, %v1019
        %v1021 = vsel %vm1008, %v1018, %v1000
        %v1022 = vsel %vm1008, %v1020, %v1002
        %v1025 = vcombine.low %v1021, %v1022
        %v1027 = vunpack.c.l.s4 1983009808
        %v1028 = vunpack.c.0.s8 %v1027
        %v1029 = vlaneseq
        %v1030 = vshrl.u32 %v1029, 7
        %v1031 = vsub.s32 %v1028, %v1030
        %v1032 = vrot.slane %v1025, %v1031
        %1034 = vst [vmem:[%s272] sm:$0xf] %v1032
        %s1035 = sand.u32 %s181, 1
        %s1036 = scalar_lea.sflag [#allocation3], %s1035
        %s1037 = sand.u32 %s181, 1
        %s1038 = smul.addr %s1037, 4
        %s1039 = scalar_lea.vmem [#allocation2], %s1038
        // Predicated region
        $region49: #{_forward_impl.1} parent=47 // pred_check
          %p1040 = pneg %p191
        $region50: #{_forward_impl.1} parent=47 // pred_check_branch
          %1042 = sbr.rel (%p1040) target = $region52
        $region51: #{_forward_impl.1} parent=47 // pred_region
          %s1043 = smul.u32 2, %s21
          %s1045 = ssub.s32 64, 64
          %1046 = vsyncadd %s1036, %s1045
          %s1047 = smul.addr %s1043, 32
          %s1048 = scalar_lea.hbm %s7, %s1047
          %s1050 = sshll.u32 %s1039, 4
          %s1051 = int_to_ptr.vmem [resolvable:$true] %s1050
          %1053 = dma.vmem_to_hbm [thread:$0]  %s1051, 64, %s1048, %s1036
        $region52: #{_forward_impl.1} parent=47 // pred_fallthru
          _
      $region48: #{_forward_impl.1} parent=5 // pred_fallthru
        _
      %p1054 = scmp.le.s32.totalorder 2, %s16
      // Predicated region
      $region53: #{_forward_impl.1} parent=5 // pred_check
        %p1055 = pneg %p1054
      $region54: #{_forward_impl.1} parent=5 // pred_check_branch
        %1057 = sbr.rel (%p1055) target = $region56
      $region55: #{_forward_impl.1} parent=5 // pred_region
        %s1058 = ssub.s32 %s16, 2
        // Predicated region
        $region57: #{_forward_impl.1} parent=55 // pred_check
          %p1059 = pneg %p197
        $region58: #{_forward_impl.1} parent=55 // pred_check_branch
          %1061 = sbr.rel (%p1059) target = $region60
        $region59: #{_forward_impl.1} parent=55 // pred_region
          %s1062 = sand.u32 %s182, 1
          %s1063 = scalar_lea.sflag [#allocation3], %s1062
          %s1064 = sand.u32 %s182, 1
          %s1065 = smul.addr %s1064, 4
          %s1066 = scalar_lea.vmem [#allocation2], %s1065
          %1067 = dma.done %s1063, 64
        $region60: #{_forward_impl.1} parent=55 // pred_fallthru
          _
      $region56: #{_forward_impl.1} parent=5 // pred_fallthru
        _
    $region6: #{_forward_impl.1} parent=1 // loop_footer
      %s20 = sadd.s32 1, %s16
    $region7: #{_forward_impl.1} parent=1 // loop_footer_branch
      %15 = sbr.rel target = $region3
    $region8: #{_forward_impl.1} parent=1 // loop_exit
      _
    %1068 = vsyncpa [#allocation3], 1
    %s1069 = scalar_lea.sflag [#allocation3], 1
    %1070 = vsyncpa %s1069, 1

</llo_original>
